<compile_context>
chip_gen: v5e
topology: v5e:2x2
jax: 0.10.0
libtpu: 0.0.40
codegen_flags: <defaults>
</compile_context>

<pallas_src>
import re
from functools import partial

import jax
import jax.numpy as jnp
from jax.experimental import pallas as pl
from jax.experimental.pallas import tpu as pltpu

SELU_ALPHA = 1.6732632423543772
SELU_SCALE = 1.0507009873554805


def _selu(h):
    # exp goes to the EUP; where/select/mul on the VPU.  Works in f32 or bf16.
    return SELU_SCALE * jnp.where(h > 0, h, SELU_ALPHA * (jnp.exp(h) - 1))


def _elementwise_dtype():
    """bf16 elementwise on v6e/v7x (native bf16 VPU/EUP); f32 on v5e and older."""
    try:
        kind = jax.devices()[0].device_kind.lower()
        m = re.search(r"(\d+)", kind)
        gen = int(m.group(1)) if m else 0
        return jnp.bfloat16 if gen >= 6 else jnp.float32
    except Exception:  # pragma: no cover - non-TPU fallback
        return jnp.float32


def _round_up(a, b):
    return pl.cdiv(a, b) * b


def mlp_kernel(x_ref, w1_ref, w2_ref, b2_ref, w3_ref, b3_ref, out_ref, *, elem_dtype):
    # x_ref:  (9,  TN) bf16   rows 0..7 = features, row 8 = ones (bias fold)
    # w1_ref: (20, 9)  bf16   PyTorch (out, in) weight with b1 as 9th column
    # w2_ref: (8, 20)  bf16
    # b2_ref: (8, 1)   f32
    # w3_ref: (8, 1)   f32    Linear(8,1) weight as a sublane column
    # b3_ref: (1, 1)   f32
    # out_ref:(1, TN)  f32    lane-dense, written once per grid step
    x = x_ref[...]

    # Linear(8, 20) + SELU — bf16 MXU matmul, f32 accumulate; b1 folded into MXU.
    h = jnp.dot(w1_ref[...], x, preferred_element_type=jnp.float32)   # (20, TN) f32
    h = _selu(h.astype(elem_dtype))                                   # (20, TN)

    # Linear(20, 8) + SELU
    h = jnp.dot(w2_ref[...], h.astype(jnp.bfloat16),
                preferred_element_type=jnp.float32) + b2_ref[...]     # (8, TN) f32
    h = _selu(h.astype(elem_dtype))                                   # (8, TN)

    # Linear(8, 1): VPU broadcast-multiply + sublane reduction (no 1-row matmul)
    z = jnp.sum(w3_ref[...] * h.astype(jnp.float32),
                axis=0, keepdims=True) + b3_ref[...]                  # (1, TN) f32

    # Sigmoid: exp on the EUP + approximate reciprocal on the EUP (no f32 divide)
    out_ref[...] = pl.reciprocal(1.0 + jnp.exp(-z), approx=True)


@partial(jax.jit, static_argnames=("num_tiles", "tn", "elem_dtype"))
def _forward_2d(xf, w1, b1, w2, b2, w3, b3, *, num_tiles, tn, elem_dtype):
    M, d = xf.shape
    m_pad = num_tiles * tn

    # Single fused staging pass (under jit): pad tokens, append ones row for the
    # bias fold, cast to bf16, transpose to feature-major (d+1, m_pad).
    x_aug = jnp.pad(xf.astype(jnp.bfloat16), ((0, m_pad - M), (0, 1)),
                    constant_values=1).T                               # (9, m_pad)

    w1_aug = jnp.concatenate([w1, b1[:, None]], axis=1).astype(jnp.bfloat16)  # (20, 9)
    w2b = w2.astype(jnp.bfloat16)                                      # (8, 20)
    b2c = b2[:, None].astype(jnp.float32)                              # (8, 1)
    w3c = w3.reshape(-1, 1).astype(jnp.float32)                        # (8, 1)
    b3c = b3.reshape(1, 1).astype(jnp.float32)                         # (1, 1)

    def resident(a):
        nd = a.ndim
        return pl.BlockSpec(a.shape, lambda i: (0,) * nd)

    out = pl.pallas_call(
        partial(mlp_kernel, elem_dtype=elem_dtype),
        out_shape=jax.ShapeDtypeStruct((1, m_pad), jnp.float32),
        grid=(num_tiles,),
        in_specs=[
            pl.BlockSpec((d + 1, tn), lambda i: (0, i)),   # x tile (lane-dense)
            resident(w1_aug), resident(w2b), resident(b2c),
            resident(w3c), resident(b3c),
        ],
        out_specs=pl.BlockSpec((1, tn), lambda i: (0, i)),
        compiler_params=pltpu.CompilerParams(
            dimension_semantics=("parallel",)),
    )(x_aug, w1_aug, w2b, b2c, w3c, b3c)

    return out[0, :M]


def linear_model_mean_forward(x, params, *, max_tile=None, elem_dtype=None):
    """x: (..., 8) float32 -> (..., 1) float32, matching LinearModel_mean.forward."""
    if elem_dtype is None:
        elem_dtype = _elementwise_dtype()
    if max_tile is None:
        # bf16 intermediates (v6e/v7x) are half the size -> bigger lane tile.
        max_tile = 32768 if elem_dtype == jnp.bfloat16 else 16384

    w1, b1, w2, b2, w3, b3 = params                # PyTorch layout: w (out,in)
    lead = x.shape[:-1]
    d = x.shape[-1]
    xf = x.reshape(-1, d)
    M = xf.shape[0]

    if M == 0:                                     # degenerate empty input
        return jnp.zeros(lead + (1,), jnp.float32)

    # Derive the lane tile from the tile count (bounds padding to <128/tile) and
    # keep >= 2 tiles for large M so v7x's two TensorCores both get work.
    num_tiles = int(pl.cdiv(M, max_tile))
    if M >= 2 * 128:
        num_tiles = max(num_tiles, 2)
    tn = int(_round_up(pl.cdiv(M, num_tiles), 128))

    flat = _forward_2d(xf, w1, b1, w2, b2, w3, b3,
                       num_tiles=num_tiles, tn=tn, elem_dtype=elem_dtype)
    return flat.reshape(lead + (1,))


def init_params(key):
    """Deterministic PyTorch-style init (uniform +-1/sqrt(fan_in)); w is (out, in)."""
    def linear(k, fan_in, fan_out):
        kw, kb = jax.random.split(k)
        bound = 1.0 / (fan_in ** 0.5)
        w = jax.random.uniform(kw, (fan_out, fan_in), jnp.float32, -bound, bound)
        b = jax.random.uniform(kb, (fan_out,), jnp.float32, -bound, bound)
        return w, b

    k1, k2, k3 = jax.random.split(key, 3)
    w1, b1 = linear(k1, 8, 20)
    w2, b2 = linear(k2, 20, 8)
    w3, b3 = linear(k3, 8, 1)
    return (w1, b1, w2, b2, w3, b3)


def linear_model_mean_reference(x, params, elem_dtype=jnp.float32):
    """Pure-JAX reference mirroring the kernel's mixed-precision policy."""
    w1, b1, w2, b2, w3, b3 = params
    h = jnp.dot(x.astype(jnp.bfloat16), w1.astype(jnp.bfloat16).T,
                preferred_element_type=jnp.float32)
    h = h + b1.astype(jnp.bfloat16).astype(jnp.float32)
    h = _selu(h.astype(elem_dtype))
    h = jnp.dot(h.astype(jnp.bfloat16), w2.astype(jnp.bfloat16).T,
                preferred_element_type=jnp.float32) + b2
    h = _selu(h.astype(elem_dtype))
    z = h.astype(jnp.float32) @ w3.astype(jnp.float32).T + b3
    return 1.0 / (1.0 + jnp.exp(-z))


def linear_model_mean_reference_f32(x, params):
    """True fp32 reference (exactly the PyTorch module's math)."""
    w1, b1, w2, b2, w3, b3 = params
    h = _selu(x @ w1.T + b1)
    h = _selu(h @ w2.T + b2)
    return jax.nn.sigmoid(h @ w3.T + b3)


if __name__ == "__main__":
    key = jax.random.PRNGKey(0)
    k_x, k_x2, k_p = jax.random.split(key, 3)
    params = init_params(k_p)
    elem_dtype = _elementwise_dtype()

    # Small case matching the module's natural shapes: (batch=2, seq=8, features=8).
    B, N, D = 2, 8, 8
    x = jax.random.normal(k_x, (B, N, D), dtype=jnp.float32)
    out = jax.block_until_ready(linear_model_mean_forward(x, params))
    ref = linear_model_mean_reference(x, params, elem_dtype)
    ref32 = linear_model_mean_reference_f32(x, params)
    assert out.shape == (B, N, 1), out.shape
    assert jnp.allclose(out, ref, rtol=5e-3, atol=5e-3)
    # bf16 quantization is intentional; stays close to the true fp32 model.
    assert jnp.allclose(out, ref32, atol=3e-2)

    # Larger, non-multiple-of-128 token count: exercises the >=2-tile grid,
    # tile derivation and the token-padding path.
    x2 = jax.random.normal(k_x2, (500, D), dtype=jnp.float32)
    out2 = jax.block_until_ready(linear_model_mean_forward(x2, params))
    ref2 = linear_model_mean_reference(x2, params, elem_dtype)
    assert out2.shape == (500, 1), out2.shape
    assert jnp.allclose(out2, ref2, rtol=5e-3, atol=5e-3)

    print("KERNEL_OK")
</pallas_src>

<mosaic_0001>
module attributes {stable_mosaic.version = 11 : i64} {
  func.func @mlp_kernel(%arg0: i32, %arg1: memref<9x128xbf16, #tpu.memory_space<vmem>>, %arg2: memref<20x9xbf16, #tpu.memory_space<vmem>>, %arg3: memref<8x20xbf16, #tpu.memory_space<vmem>>, %arg4: memref<8x1xf32, #tpu.memory_space<vmem>>, %arg5: memref<8x1xf32, #tpu.memory_space<vmem>>, %arg6: memref<1x1xf32, #tpu.memory_space<vmem>>, %arg7: memref<1x128xf32, #tpu.memory_space<vmem>>) attributes {dimension_semantics = [#tpu.dimension_semantics<parallel>], iteration_bounds = array<i64: 1>, scalar_prefetch = 0 : i64, scratch_operands = 0 : i64, tpu.core_type = #tpu.core_type<tc>, window_params = [{transform_indices = @transform_0, window_bounds = array<i64: 9, 128>}, {pipeline_mode = #tpu.pipeline_mode<synchronous>, transform_indices = @transform_1, window_bounds = array<i64: 20, 9>}, {pipeline_mode = #tpu.pipeline_mode<synchronous>, transform_indices = @transform_2, window_bounds = array<i64: 8, 20>}, {pipeline_mode = #tpu.pipeline_mode<synchronous>, transform_indices = @transform_3, window_bounds = array<i64: 8, 1>}, {pipeline_mode = #tpu.pipeline_mode<synchronous>, transform_indices = @transform_4, window_bounds = array<i64: 8, 1>}, {pipeline_mode = #tpu.pipeline_mode<synchronous>, transform_indices = @transform_5, window_bounds = array<i64: 1, 1>}, {transform_indices = @transform_6, window_bounds = array<i64: 1, 128>}]} {
    %c0 = arith.constant 0 : index
    %c0_0 = arith.constant 0 : index
    %0 = vector.load %arg1[%c0, %c0_0] : memref<9x128xbf16, #tpu.memory_space<vmem>>, vector<9x128xbf16>
    %c0_1 = arith.constant 0 : index
    %c0_2 = arith.constant 0 : index
    %1 = vector.load %arg2[%c0_1, %c0_2] : memref<20x9xbf16, #tpu.memory_space<vmem>>, vector<20x9xbf16>
    %cst = arith.constant dense<0.000000e+00> : vector<20x128xf32>
    %2 = tpu.matmul %1, %0, %cst {dimension_numbers = #tpu.dot_dimension_numbers<[1], [0], [0], [1], [0, 0, 1, 1], [], []>} : vector<20x9xbf16>, vector<9x128xbf16>, vector<20x128xf32> -> vector<20x128xf32>
    %cst_3 = arith.constant 0.000000e+00 : f32
    %3 = vector.broadcast %cst_3 : f32 to vector<20x128xf32>
    %4 = arith.cmpf ogt, %2, %3 : vector<20x128xf32>
    %5 = math.exp %2 : vector<20x128xf32>
    %cst_4 = arith.constant 1.000000e+00 : f32
    %6 = vector.broadcast %cst_4 : f32 to vector<20x128xf32>
    %7 = arith.subf %5, %6 : vector<20x128xf32>
    %cst_5 = arith.constant 1.67326319 : f32
    %8 = vector.broadcast %cst_5 : f32 to vector<20x128xf32>
    %9 = arith.mulf %8, %7 : vector<20x128xf32>
    %10 = arith.select %4, %2, %9 : vector<20x128xi1>, vector<20x128xf32>
    %cst_6 = arith.constant 1.05070102 : f32
    %11 = vector.broadcast %cst_6 : f32 to vector<20x128xf32>
    %12 = arith.mulf %11, %10 : vector<20x128xf32>
    %c0_7 = arith.constant 0 : index
    %c0_8 = arith.constant 0 : index
    %13 = vector.load %arg3[%c0_7, %c0_8] : memref<8x20xbf16, #tpu.memory_space<vmem>>, vector<8x20xbf16>
    %14 = arith.truncf %12 : vector<20x128xf32> to vector<20x128xbf16>
    %cst_9 = arith.constant dense<0.000000e+00> : vector<8x128xf32>
    %15 = tpu.matmul %13, %14, %cst_9 {dimension_numbers = #tpu.dot_dimension_numbers<[1], [0], [0], [1], [0, 0, 1, 1], [], []>} : vector<8x20xbf16>, vector<20x128xbf16>, vector<8x128xf32> -> vector<8x128xf32>
    %c0_10 = arith.constant 0 : index
    %c0_11 = arith.constant 0 : index
    %16 = vector.load %arg4[%c0_10, %c0_11] : memref<8x1xf32, #tpu.memory_space<vmem>>, vector<8x1xf32>
    %17 = vector.broadcast %16 : vector<8x1xf32> to vector<8x128xf32>
    %18 = arith.addf %15, %17 : vector<8x128xf32>
    %cst_12 = arith.constant 0.000000e+00 : f32
    %19 = vector.broadcast %cst_12 : f32 to vector<8x128xf32>
    %20 = arith.cmpf ogt, %18, %19 : vector<8x128xf32>
    %21 = math.exp %18 : vector<8x128xf32>
    %cst_13 = arith.constant 1.000000e+00 : f32
    %22 = vector.broadcast %cst_13 : f32 to vector<8x128xf32>
    %23 = arith.subf %21, %22 : vector<8x128xf32>
    %cst_14 = arith.constant 1.67326319 : f32
    %24 = vector.broadcast %cst_14 : f32 to vector<8x128xf32>
    %25 = arith.mulf %24, %23 : vector<8x128xf32>
    %26 = arith.select %20, %18, %25 : vector<8x128xi1>, vector<8x128xf32>
    %cst_15 = arith.constant 1.05070102 : f32
    %27 = vector.broadcast %cst_15 : f32 to vector<8x128xf32>
    %28 = arith.mulf %27, %26 : vector<8x128xf32>
    %c0_16 = arith.constant 0 : index
    %c0_17 = arith.constant 0 : index
    %29 = vector.load %arg5[%c0_16, %c0_17] : memref<8x1xf32, #tpu.memory_space<vmem>>, vector<8x1xf32>
    %30 = vector.broadcast %29 : vector<8x1xf32> to vector<8x128xf32>
    %31 = arith.mulf %30, %28 : vector<8x128xf32>
    %cst_18 = arith.constant dense<0.000000e+00> : vector<128xf32>
    %32 = vector.multi_reduction <add>, %31, %cst_18 [0] : vector<8x128xf32> to vector<128xf32>
    %33 = vector.shape_cast %32 : vector<128xf32> to vector<1x128xf32>
    %c0_19 = arith.constant 0 : index
    %c0_20 = arith.constant 0 : index
    %34 = vector.load %arg6[%c0_19, %c0_20] : memref<1x1xf32, #tpu.memory_space<vmem>>, vector<1x1xf32>
    %35 = vector.broadcast %34 : vector<1x1xf32> to vector<1x128xf32>
    %36 = arith.addf %33, %35 : vector<1x128xf32>
    %cst_21 = arith.constant 0.000000e+00 : f32
    %37 = vector.broadcast %cst_21 : f32 to vector<1x128xf32>
    %38 = arith.subf %37, %36 : vector<1x128xf32>
    %39 = math.exp %38 : vector<1x128xf32>
    %cst_22 = arith.constant 1.000000e+00 : f32
    %40 = vector.broadcast %cst_22 : f32 to vector<1x128xf32>
    %41 = arith.addf %40, %39 : vector<1x128xf32>
    %42 = tpu.reciprocal %41 {approx = true} : vector<1x128xf32> -> vector<1x128xf32>
    %c0_23 = arith.constant 0 : index
    %c0_24 = arith.constant 0 : index
    %43 = vector.load %arg7[%c0_23, %c0_24] : memref<1x128xf32, #tpu.memory_space<vmem>>, vector<1x128xf32>
    tpu.vector_store %arg7[%c0_23, %c0_24], %42 {strides = array<i32>} : memref<1x128xf32, #tpu.memory_space<vmem>>, vector<1x128xf32>,
    return
  }
  func.func @transform_0(%arg0: i32) -> (i32, i32) {
    %c0_i32 = arith.constant 0 : i32
    %c0_i32_0 = arith.constant 0 : i32
    return %c0_i32, %arg0 : i32, i32
  }
  func.func @transform_1(%arg0: i32) -> (i32, i32) {
    %c0_i32 = arith.constant 0 : i32
    %c0_i32_0 = arith.constant 0 : i32
    %c0_i32_1 = arith.constant 0 : i32
    return %c0_i32, %c0_i32_0 : i32, i32
  }
  func.func @transform_2(%arg0: i32) -> (i32, i32) {
    %c0_i32 = arith.constant 0 : i32
    %c0_i32_0 = arith.constant 0 : i32
    %c0_i32_1 = arith.constant 0 : i32
    return %c0_i32, %c0_i32_0 : i32, i32
  }
  func.func @transform_3(%arg0: i32) -> (i32, i32) {
    %c0_i32 = arith.constant 0 : i32
    %c0_i32_0 = arith.constant 0 : i32
    %c0_i32_1 = arith.constant 0 : i32
    return %c0_i32, %c0_i32_0 : i32, i32
  }
  func.func @transform_4(%arg0: i32) -> (i32, i32) {
    %c0_i32 = arith.constant 0 : i32
    %c0_i32_0 = arith.constant 0 : i32
    %c0_i32_1 = arith.constant 0 : i32
    return %c0_i32, %c0_i32_0 : i32, i32
  }
  func.func @transform_5(%arg0: i32) -> (i32, i32) {
    %c0_i32 = arith.constant 0 : i32
    %c0_i32_0 = arith.constant 0 : i32
    %c0_i32_1 = arith.constant 0 : i32
    return %c0_i32, %c0_i32_0 : i32, i32
  }
  func.func @transform_6(%arg0: i32) -> (i32, i32) {
    %c0_i32 = arith.constant 0 : i32
    %c0_i32_0 = arith.constant 0 : i32
    return %c0_i32, %arg0 : i32, i32
  }
}

</mosaic_0001>

<llo_original>
// kernel: _forward_2d.1
$region0: #{_forward_2d.1}
  #allocation0 [shape = 'u32[]', space=smem, size = 0x4, offset = 0x4, fixed_abs, tag = 'smem constant byte address 0x4 - core index']
  #allocation1 [shape = 'u32[72,128]{1,0:T(1,128)}', space=vmem, size = 0x9000, scoped, tag = 'internal scratch']
  #allocation2 [shape = 'f32[1,1]{1,0:T(1,128)S(1)}', space=vmem, size = 0x200, scoped, tag = 'scoped memory for _forward_2d.1']
  %s0 = inlined_call_operand.vmem [shape: bf16[9,128], index: 0, kind: input, shape index: {}]
  %s1 = inlined_call_operand.vmem [shape: bf16[20,9], index: 1, kind: input, shape index: {}]
  %s2 = inlined_call_operand.vmem [shape: bf16[8,20], index: 2, kind: input, shape index: {}]
  %s3 = inlined_call_operand.vmem [shape: f32[8,1], index: 3, kind: input, shape index: {}]
  %s4 = inlined_call_operand.vmem [shape: f32[8,1], index: 4, kind: input, shape index: {}]
  %s5 = inlined_call_operand.<no memory space> [shape: f32[1,1], index: 5, kind: input, shape index: {}]
  %s6 = inlined_call_operand.vmem [shape: f32[1,128], index: 6, kind: output, shape index: {}]
  %s7 = sld [smem:[#allocation0]]
  $region34: #{_forward_2d.1} parent=0
    _
  %s9 = ssub.s32 1, %s7
  %s10 = scalar_select 0, %s9, %s7
  %v11 = vstv %s5
  %12 = vst [vmem:[#allocation2] sm:$0x1] %v11
  // Predicated region
  $region2: #{_forward_2d.1} parent=0 // pred_check
    _
  $region3: #{_forward_2d.1} parent=0 // pred_check_branch
    %14 = sbr.rel (0) target = $region5
  $region4: #{_forward_2d.1} parent=0 // pred_region
    _
  $region5: #{_forward_2d.1} parent=0 // pred_fallthru
    _
  // Predicated region
  $region6: #{_forward_2d.1} parent=0 // pred_check
    _
  $region7: #{_forward_2d.1} parent=0 // pred_check_branch
    %16 = sbr.rel (0) target = $region9
  $region8: #{_forward_2d.1} parent=0 // pred_region
    _
  $region9: #{_forward_2d.1} parent=0 // pred_fallthru
    _
  // Predicated region
  $region10: #{_forward_2d.1} parent=0 // pred_check
    _
  $region11: #{_forward_2d.1} parent=0 // pred_check_branch
    %18 = sbr.rel (0) target = $region13
  $region12: #{_forward_2d.1} parent=0 // pred_region
    _
  $region13: #{_forward_2d.1} parent=0 // pred_fallthru
    _
  // Predicated region
  $region14: #{_forward_2d.1} parent=0 // pred_check
    _
  $region15: #{_forward_2d.1} parent=0 // pred_check_branch
    %20 = sbr.rel (0) target = $region17
  $region16: #{_forward_2d.1} parent=0 // pred_region
    _
  $region17: #{_forward_2d.1} parent=0 // pred_fallthru
    _
  // Predicated region
  $region18: #{_forward_2d.1} parent=0 // pred_check
    _
  $region19: #{_forward_2d.1} parent=0 // pred_check_branch
    %22 = sbr.rel (0) target = $region21
  $region20: #{_forward_2d.1} parent=0 // pred_region
    _
  $region21: #{_forward_2d.1} parent=0 // pred_fallthru
    _
  // Predicated region
  $region22: #{_forward_2d.1} parent=0 // pred_check
    _
  $region23: #{_forward_2d.1} parent=0 // pred_check_branch
    %24 = sbr.rel (0) target = $region25
  $region24: #{_forward_2d.1} parent=0 // pred_region
    _
  $region25: #{_forward_2d.1} parent=0 // pred_fallthru
    _
  %v26 = vld [vmem:[%s0] sm:$0xf]
  %v27 = vld [vmem:[%s0 + $0x4] sm:$0x1]
  %v28 = vld [vmem:[%s1] sm:$0xf]
  %v29 = vld [vmem:[%s1 + $0x4] sm:$0xf]
  %v30 = vld [vmem:[%s1 + $0x8] sm:$0x3]
  %v34 = vunpack.c.l.b16 %v28
  %v35 = vunpack.c.l.b16 %v29
  %v36 = vunpack.c.l.b16 %v30
  %v37 = vpack.c.b16 %v35, %v34
  %v38 = vpack.c.b16 %v36, %v36
  %v41 = vunpack.c.l.b16 %v26
  %v42 = vunpack.c.l.b16 %v27
  %v43 = vpack.c.b16 %v42, %v41
  %vm44 = vcmask 72704
  %v46 = vsel %vm44, %v37, 0
  %v49 = vsel %vm44, %v38, 0
  %vm51 = vcmask 1043456
  %vm52 = vcmask 1044480
  %v53 = vsel %vm51, 4294967295, 65535
  %v54 = vsel %vm52, %v53, 0
  %v56 = vand.u32 %v43, %v54
  %58 = vmatpush.bf16.msra.mxu0 0
  %59 = vmatpush.bf16.msra.mxu0 0
  %60 = vmatpush.bf16.msra.mxu0 0
  %61 = vmatpush.bf16.msra.mxu0 0
  %62 = vmatpush.bf16.msra.mxu0 0
  %63 = vmatpush.bf16.msra.mxu0 0
  %64 = vmatpush.bf16.msra.mxu0 0
  %65 = vmatpush.bf16.msra.mxu0 %v56
  %66 = vmatmul.bf16.gmra.mxu0 %v46
  %v67 = vpop.f32.mrf.mxu0
  %v68 = vadd.f32 0.0, %v67
  %v69 = vpop.f32.mrf.mxu0
  %v70 = vadd.f32 0.0, %v69
  %71 = vmatmul.bf16.gmra.mxu0 %v49
  %v72 = vpop.f32.mrf.mxu0
  %v73 = vadd.f32 0.0, %v72
  %v74 = vpop.f32.mrf.mxu0
  %75 = vdwg.mxu0
  %vm76 = vcmp.gt.f32.partialorder %v68, 0.0
  %vm77 = vcmp.gt.f32.partialorder %v70, 0.0
  %vm78 = vcmp.gt.f32.partialorder %v73, 0.0
  %v79 = vmul.f32 %v68, 1.442695
  %v80 = vpow.pop %v79
  %v81 = vmul.f32 %v70, 1.442695
  %v82 = vpow.pop %v81
  %v83 = vmul.f32 %v73, 1.442695
  %v84 = vpow.pop %v83
  %v85 = vsub.f32 %v80, 1.0
  %v86 = vsub.f32 %v82, 1.0
  %v87 = vsub.f32 %v84, 1.0
  %v88 = vmul.f32 %v85, 1.6732632
  %v89 = vmul.f32 %v86, 1.6732632
  %v90 = vmul.f32 %v87, 1.6732632
  %v91 = vsel %vm76, %v68, %v88
  %v92 = vsel %vm77, %v70, %v89
  %v93 = vsel %vm78, %v73, %v90
  %v94 = vmul.f32 %v91, 1.050701
  %v95 = vmul.f32 %v92, 1.050701
  %v96 = vmul.f32 %v93, 1.050701
  %v97 = vld [vmem:[%s2] sm:$0xf]
  %v98 = vpack.c.bf16 %v95, %v94
  %v99 = vpack.c.bf16 %v96, %v96
  %v100 = vld [vmem:[%s3] sm:$0xff]
  %102 = vset.pattern.permute.xlu0 0
  %103 = vperm.xlu0 %102, %v100
  %v104 = vpop.permute.xlu0 %103
  %vm106 = vcmask 162816
  %v108 = vsel %vm106, %v97, 0
  %vm110 = vcmask 1041408
  %v112 = vsel %vm110, %v99, 0
  %114 = vmatpush.bf16.msra.mxu0 0
  %115 = vmatpush.bf16.msra.mxu0 0
  %116 = vmatpush.bf16.msra.mxu0 0
  %117 = vmatpush.bf16.msra.mxu0 0
  %118 = vmatpush.bf16.msra.mxu0 0
  %119 = vmatpush.bf16.msra.mxu0 0
  %120 = vmatpush.bf16.msra.mxu0 %v112
  %121 = vmatpush.bf16.msra.mxu0 %v98
  %122 = vmatmul.bf16.gmra.mxu0 %v108
  %v123 = vpop.f32.mrf.mxu0
  %v124 = vadd.f32 %v104, %v123
  %v125 = vpop.f32.mrf.mxu0
  %126 = vdwg.mxu0
  %vm127 = vcmp.gt.f32.partialorder %v124, 0.0
  %v128 = vmul.f32 %v124, 1.442695
  %v129 = vpow.pop %v128
  %v130 = vsub.f32 %v129, 1.0
  %v131 = vmul.f32 %v130, 1.6732632
  %v132 = vsel %vm127, %v124, %v131
  %v133 = vmul.f32 %v132, 1.050701
  %v134 = vld [vmem:[%s4] sm:$0xff]
  %136 = vset.pattern.permute.xlu0 0
  %137 = vperm.xlu0 %136, %v134
  %v138 = vpop.permute.xlu0 %137
  %v140 = vmul.f32 %v138, %v133
  %v141 = vrot.slane %v140, 4
  %v142 = vadd.f32 %v140, %v141
  %v143 = vrot.slane %v142, 2
  %v144 = vadd.f32 %v142, %v143
  %v145 = vrot.slane %v144, 1
  %v146 = vadd.f32 %v144, %v145
  %v147 = vld [vmem:[#allocation2] sm:$0x1]
  %149 = vset.pattern.permute.xlu0 0
  %150 = vperm.xlu0 %149, %v147
  %v151 = vpop.permute.xlu0 %150
  %v153 = vperm.slane %v151, 0
  %v154 = vadd.f32 %v146, %v153
  %v155 = vsub.f32 0.0, %v154
  %v156 = vmul.f32 %v155, 1.442695
  %v157 = vpow.pop %v156
  %v158 = vadd.f32 %v157, 1.0
  %v159 = vrcp.pop %v158
  %160 = vst [vmem:[%s6] sm:$0x1] %v159
  // Predicated region
  $region26: #{_forward_2d.1} parent=0 // pred_check
    _
  $region27: #{_forward_2d.1} parent=0 // pred_check_branch
    %162 = sbr.rel (0) target = $region29
  $region28: #{_forward_2d.1} parent=0 // pred_region
    _
  $region29: #{_forward_2d.1} parent=0 // pred_fallthru
    _
  // Predicated region
  $region30: #{_forward_2d.1} parent=0 // pred_check
    _
  $region31: #{_forward_2d.1} parent=0 // pred_check_branch
    %164 = sbr.rel (0) target = $region33
  $region32: #{_forward_2d.1} parent=0 // pred_region
    _
  $region33: #{_forward_2d.1} parent=0 // pred_fallthru
    _

</llo_original>
